<compile_context>
chip_gen: v5e
topology: v5e:2x2
jax: 0.10.0
libtpu: 0.0.40
codegen_flags: <defaults>
</compile_context>

<pallas_src>
import jax
import jax.numpy as jnp
from jax.experimental import pallas as pl
from jax.experimental.pallas import tpu as pltpu


def _frobenius_kernel(p_ref, g_ref, out_ref):
    """p_ref, g_ref: (16, BN) blocks, lane axis = batch; row r = element (r//4, r%4).

    out_ref: (1, 1) f32 in SMEM -> this block's partial sum of (pred@igt - I)^2.
    """
    p = p_ref[...].astype(jnp.float32)   # no-op if input already f32
    g = g_ref[...].astype(jnp.float32)

    # Hoist the 32 row views once (each row reused 4x below).
    prow = [p[r:r + 1, :] for r in range(16)]   # pred[b, r//4, r%4] per lane
    grow = [g[r:r + 1, :] for r in range(16)]   # igt [b, r//4, r%4] per lane

    total = None
    for i in range(4):
        for k in range(4):
            # error[b, i, k] = sum_j pred[b, i, j] * igt[b, j, k]  (pure VALU FMAs)
            e = prow[4 * i + 0] * grow[0 * 4 + k]
            for j in range(1, 4):
                e = e + prow[4 * i + j] * grow[4 * j + k]
            if i == k:                      # subtract identity only on the diagonal
                e = e - jnp.float32(1.0)
            sq = e * e
            total = sq if total is None else total + sq

    # Single cross-lane (XLU) reduce per block; scalar partial to SMEM.
    out_ref[0, 0] = jnp.sum(total)


def frobenius_norm_loss(predicted, igt, *, max_block_b=8192):
    """predicted, igt: (B, 4, 4) arrays. Returns scalar f32 loss == sum||P@G - I||_F^2 / B."""
    assert predicted.shape == igt.shape
    assert predicted.shape[-2:] == (4, 4)
    B = predicted.shape[0]
    dtype = predicted.dtype
    itemsize = jnp.dtype(dtype).itemsize

    # Lane-dense layout: (B, 4, 4) -> (16, B), batch on the 128-lane axis.
    p = predicted.reshape(B, 16).T
    g = igt.reshape(B, 16).T

    # Tile the batch axis: lane extent must be a multiple of 128 and of the
    # block width. Pad the tail with identity matrices (P=I, G=I -> zero
    # contribution), keeping the padding <= grid_size * 128 columns.
    b_rounded = pl.cdiv(B, 128) * 128
    grid_b = pl.cdiv(b_rounded, max_block_b)
    block_b = pl.cdiv(pl.cdiv(b_rounded, grid_b), 128) * 128
    b_padded = grid_b * block_b
    pad = b_padded - B
    if pad:
        eye_col = jnp.eye(4, dtype=dtype).reshape(16, 1)
        pad_cols = jnp.broadcast_to(eye_col, (16, pad))
        p = jnp.concatenate([p, pad_cols], axis=1)
        g = jnp.concatenate([g, pad_cols], axis=1)

    partials = pl.pallas_call(
        _frobenius_kernel,
        out_shape=jax.ShapeDtypeStruct((grid_b, 1), jnp.float32),
        grid_spec=pltpu.PrefetchScalarGridSpec(
            num_scalar_prefetch=0,
            grid=(grid_b,),
            in_specs=[
                pl.BlockSpec((16, block_b), lambda i: (0, i)),
                pl.BlockSpec((16, block_b), lambda i: (0, i)),
            ],
            out_specs=pl.BlockSpec(
                (1, 1), lambda i: (i, 0),
                memory_space=pltpu.MemorySpace.SMEM),
        ),
        compiler_params=pltpu.CompilerParams(
            dimension_semantics=("parallel",)),   # independent partials -> megacore-friendly
        cost_estimate=pl.CostEstimate(
            flops=176 * B,
            transcendentals=0,
            bytes_accessed=2 * b_padded * 16 * itemsize + grid_b * 4),
    )(p, g)

    # mse_loss(mean over B*16) * 16 == sq_sum / B
    return jnp.sum(partials) / jnp.float32(B)


class FrobeniusNormLoss:
    """Stateless module mirroring the PyTorch FrobeniusNormLoss."""

    def __call__(self, predicted, igt):
        return frobenius_norm_loss(predicted, igt)


if __name__ == "__main__":
    key = jax.random.PRNGKey(0)
    k1, k2 = jax.random.split(key)

    # Small batch of 4x4 transform matrices (matches the PyTorch module's input).
    B = 2
    predicted = jax.random.normal(k1, (B, 4, 4), dtype=jnp.float32)
    igt = jax.random.normal(k2, (B, 4, 4), dtype=jnp.float32)

    loss_fn = FrobeniusNormLoss()
    loss = jax.block_until_ready(loss_fn(predicted, igt))

    # Pure-JAX reference check (same math, no Pallas).
    err = jnp.einsum("bij,bjk->bik", predicted, igt)
    ref = jnp.mean((err - jnp.eye(4)[None]) ** 2) * 16.0
    assert jnp.allclose(loss, ref, rtol=1e-5, atol=1e-5), (loss, ref)

    # Second check: non-multiple-of-128 batch with a multi-block grid
    # (exercises padding, per-block partials and the parallel grid axis).
    B2 = 300
    p2 = jax.random.normal(jax.random.PRNGKey(1), (B2, 4, 4), dtype=jnp.float32)
    g2 = jax.random.normal(jax.random.PRNGKey(2), (B2, 4, 4), dtype=jnp.float32)
    loss2 = jax.block_until_ready(frobenius_norm_loss(p2, g2, max_block_b=128))
    err2 = jnp.einsum("bij,bjk->bik", p2, g2)
    ref2 = jnp.mean((err2 - jnp.eye(4)[None]) ** 2) * 16.0
    assert jnp.allclose(loss2, ref2, rtol=1e-4, atol=1e-4), (loss2, ref2)

    print("KERNEL_OK")
</pallas_src>

<mosaic_0001>
module attributes {stable_mosaic.version = 11 : i64} {
  func.func @_frobenius_kernel(%arg0: i32, %arg1: memref<16x128xf32, #tpu.memory_space<vmem>>, %arg2: memref<16x128xf32, #tpu.memory_space<vmem>>, %arg3: memref<1x1xf32, #tpu.memory_space<smem>>) attributes {dimension_semantics = [#tpu.dimension_semantics<parallel>], iteration_bounds = array<i64: 1>, scalar_prefetch = 0 : i64, scratch_operands = 0 : i64, tpu.core_type = #tpu.core_type<tc>, window_params = [{transform_indices = @transform_0, window_bounds = array<i64: 16, 128>}, {transform_indices = @transform_1, window_bounds = array<i64: 16, 128>}, {transform_indices = @transform_2, window_bounds = array<i64: 1, 1>}]} {
    %c0 = arith.constant 0 : index
    %c0_0 = arith.constant 0 : index
    %0 = vector.load %arg1[%c0, %c0_0] : memref<16x128xf32, #tpu.memory_space<vmem>>, vector<16x128xf32>
    %c0_1 = arith.constant 0 : index
    %c0_2 = arith.constant 0 : index
    %1 = vector.load %arg2[%c0_1, %c0_2] : memref<16x128xf32, #tpu.memory_space<vmem>>, vector<16x128xf32>
    %2 = vector.extract_strided_slice %0 {offsets = [0, 0], sizes = [1, 128], strides = [1, 1]} : vector<16x128xf32> to vector<1x128xf32>
    %3 = vector.extract_strided_slice %0 {offsets = [1, 0], sizes = [1, 128], strides = [1, 1]} : vector<16x128xf32> to vector<1x128xf32>
    %4 = vector.extract_strided_slice %0 {offsets = [2, 0], sizes = [1, 128], strides = [1, 1]} : vector<16x128xf32> to vector<1x128xf32>
    %5 = vector.extract_strided_slice %0 {offsets = [3, 0], sizes = [1, 128], strides = [1, 1]} : vector<16x128xf32> to vector<1x128xf32>
    %6 = vector.extract_strided_slice %0 {offsets = [4, 0], sizes = [1, 128], strides = [1, 1]} : vector<16x128xf32> to vector<1x128xf32>
    %7 = vector.extract_strided_slice %0 {offsets = [5, 0], sizes = [1, 128], strides = [1, 1]} : vector<16x128xf32> to vector<1x128xf32>
    %8 = vector.extract_strided_slice %0 {offsets = [6, 0], sizes = [1, 128], strides = [1, 1]} : vector<16x128xf32> to vector<1x128xf32>
    %9 = vector.extract_strided_slice %0 {offsets = [7, 0], sizes = [1, 128], strides = [1, 1]} : vector<16x128xf32> to vector<1x128xf32>
    %10 = vector.extract_strided_slice %0 {offsets = [8, 0], sizes = [1, 128], strides = [1, 1]} : vector<16x128xf32> to vector<1x128xf32>
    %11 = vector.extract_strided_slice %0 {offsets = [9, 0], sizes = [1, 128], strides = [1, 1]} : vector<16x128xf32> to vector<1x128xf32>
    %12 = vector.extract_strided_slice %0 {offsets = [10, 0], sizes = [1, 128], strides = [1, 1]} : vector<16x128xf32> to vector<1x128xf32>
    %13 = vector.extract_strided_slice %0 {offsets = [11, 0], sizes = [1, 128], strides = [1, 1]} : vector<16x128xf32> to vector<1x128xf32>
    %14 = vector.extract_strided_slice %0 {offsets = [12, 0], sizes = [1, 128], strides = [1, 1]} : vector<16x128xf32> to vector<1x128xf32>
    %15 = vector.extract_strided_slice %0 {offsets = [13, 0], sizes = [1, 128], strides = [1, 1]} : vector<16x128xf32> to vector<1x128xf32>
    %16 = vector.extract_strided_slice %0 {offsets = [14, 0], sizes = [1, 128], strides = [1, 1]} : vector<16x128xf32> to vector<1x128xf32>
    %17 = vector.extract_strided_slice %0 {offsets = [15, 0], sizes = [1, 128], strides = [1, 1]} : vector<16x128xf32> to vector<1x128xf32>
    %18 = vector.extract_strided_slice %1 {offsets = [0, 0], sizes = [1, 128], strides = [1, 1]} : vector<16x128xf32> to vector<1x128xf32>
    %19 = vector.extract_strided_slice %1 {offsets = [1, 0], sizes = [1, 128], strides = [1, 1]} : vector<16x128xf32> to vector<1x128xf32>
    %20 = vector.extract_strided_slice %1 {offsets = [2, 0], sizes = [1, 128], strides = [1, 1]} : vector<16x128xf32> to vector<1x128xf32>
    %21 = vector.extract_strided_slice %1 {offsets = [3, 0], sizes = [1, 128], strides = [1, 1]} : vector<16x128xf32> to vector<1x128xf32>
    %22 = vector.extract_strided_slice %1 {offsets = [4, 0], sizes = [1, 128], strides = [1, 1]} : vector<16x128xf32> to vector<1x128xf32>
    %23 = vector.extract_strided_slice %1 {offsets = [5, 0], sizes = [1, 128], strides = [1, 1]} : vector<16x128xf32> to vector<1x128xf32>
    %24 = vector.extract_strided_slice %1 {offsets = [6, 0], sizes = [1, 128], strides = [1, 1]} : vector<16x128xf32> to vector<1x128xf32>
    %25 = vector.extract_strided_slice %1 {offsets = [7, 0], sizes = [1, 128], strides = [1, 1]} : vector<16x128xf32> to vector<1x128xf32>
    %26 = vector.extract_strided_slice %1 {offsets = [8, 0], sizes = [1, 128], strides = [1, 1]} : vector<16x128xf32> to vector<1x128xf32>
    %27 = vector.extract_strided_slice %1 {offsets = [9, 0], sizes = [1, 128], strides = [1, 1]} : vector<16x128xf32> to vector<1x128xf32>
    %28 = vector.extract_strided_slice %1 {offsets = [10, 0], sizes = [1, 128], strides = [1, 1]} : vector<16x128xf32> to vector<1x128xf32>
    %29 = vector.extract_strided_slice %1 {offsets = [11, 0], sizes = [1, 128], strides = [1, 1]} : vector<16x128xf32> to vector<1x128xf32>
    %30 = vector.extract_strided_slice %1 {offsets = [12, 0], sizes = [1, 128], strides = [1, 1]} : vector<16x128xf32> to vector<1x128xf32>
    %31 = vector.extract_strided_slice %1 {offsets = [13, 0], sizes = [1, 128], strides = [1, 1]} : vector<16x128xf32> to vector<1x128xf32>
    %32 = vector.extract_strided_slice %1 {offsets = [14, 0], sizes = [1, 128], strides = [1, 1]} : vector<16x128xf32> to vector<1x128xf32>
    %33 = vector.extract_strided_slice %1 {offsets = [15, 0], sizes = [1, 128], strides = [1, 1]} : vector<16x128xf32> to vector<1x128xf32>
    %34 = arith.mulf %2, %18 : vector<1x128xf32>
    %35 = arith.mulf %3, %22 : vector<1x128xf32>
    %36 = arith.addf %34, %35 : vector<1x128xf32>
    %37 = arith.mulf %4, %26 : vector<1x128xf32>
    %38 = arith.addf %36, %37 : vector<1x128xf32>
    %39 = arith.mulf %5, %30 : vector<1x128xf32>
    %40 = arith.addf %38, %39 : vector<1x128xf32>
    %cst = arith.constant 1.000000e+00 : f32
    %41 = vector.broadcast %cst : f32 to vector<1x128xf32>
    %42 = arith.subf %40, %41 : vector<1x128xf32>
    %43 = arith.mulf %42, %42 : vector<1x128xf32>
    %44 = arith.mulf %2, %19 : vector<1x128xf32>
    %45 = arith.mulf %3, %23 : vector<1x128xf32>
    %46 = arith.addf %44, %45 : vector<1x128xf32>
    %47 = arith.mulf %4, %27 : vector<1x128xf32>
    %48 = arith.addf %46, %47 : vector<1x128xf32>
    %49 = arith.mulf %5, %31 : vector<1x128xf32>
    %50 = arith.addf %48, %49 : vector<1x128xf32>
    %51 = arith.mulf %50, %50 : vector<1x128xf32>
    %52 = arith.addf %43, %51 : vector<1x128xf32>
    %53 = arith.mulf %2, %20 : vector<1x128xf32>
    %54 = arith.mulf %3, %24 : vector<1x128xf32>
    %55 = arith.addf %53, %54 : vector<1x128xf32>
    %56 = arith.mulf %4, %28 : vector<1x128xf32>
    %57 = arith.addf %55, %56 : vector<1x128xf32>
    %58 = arith.mulf %5, %32 : vector<1x128xf32>
    %59 = arith.addf %57, %58 : vector<1x128xf32>
    %60 = arith.mulf %59, %59 : vector<1x128xf32>
    %61 = arith.addf %52, %60 : vector<1x128xf32>
    %62 = arith.mulf %2, %21 : vector<1x128xf32>
    %63 = arith.mulf %3, %25 : vector<1x128xf32>
    %64 = arith.addf %62, %63 : vector<1x128xf32>
    %65 = arith.mulf %4, %29 : vector<1x128xf32>
    %66 = arith.addf %64, %65 : vector<1x128xf32>
    %67 = arith.mulf %5, %33 : vector<1x128xf32>
    %68 = arith.addf %66, %67 : vector<1x128xf32>
    %69 = arith.mulf %68, %68 : vector<1x128xf32>
    %70 = arith.addf %61, %69 : vector<1x128xf32>
    %71 = arith.mulf %6, %18 : vector<1x128xf32>
    %72 = arith.mulf %7, %22 : vector<1x128xf32>
    %73 = arith.addf %71, %72 : vector<1x128xf32>
    %74 = arith.mulf %8, %26 : vector<1x128xf32>
    %75 = arith.addf %73, %74 : vector<1x128xf32>
    %76 = arith.mulf %9, %30 : vector<1x128xf32>
    %77 = arith.addf %75, %76 : vector<1x128xf32>
    %78 = arith.mulf %77, %77 : vector<1x128xf32>
    %79 = arith.addf %70, %78 : vector<1x128xf32>
    %80 = arith.mulf %6, %19 : vector<1x128xf32>
    %81 = arith.mulf %7, %23 : vector<1x128xf32>
    %82 = arith.addf %80, %81 : vector<1x128xf32>
    %83 = arith.mulf %8, %27 : vector<1x128xf32>
    %84 = arith.addf %82, %83 : vector<1x128xf32>
    %85 = arith.mulf %9, %31 : vector<1x128xf32>
    %86 = arith.addf %84, %85 : vector<1x128xf32>
    %cst_3 = arith.constant 1.000000e+00 : f32
    %87 = vector.broadcast %cst_3 : f32 to vector<1x128xf32>
    %88 = arith.subf %86, %87 : vector<1x128xf32>
    %89 = arith.mulf %88, %88 : vector<1x128xf32>
    %90 = arith.addf %79, %89 : vector<1x128xf32>
    %91 = arith.mulf %6, %20 : vector<1x128xf32>
    %92 = arith.mulf %7, %24 : vector<1x128xf32>
    %93 = arith.addf %91, %92 : vector<1x128xf32>
    %94 = arith.mulf %8, %28 : vector<1x128xf32>
    %95 = arith.addf %93, %94 : vector<1x128xf32>
    %96 = arith.mulf %9, %32 : vector<1x128xf32>
    %97 = arith.addf %95, %96 : vector<1x128xf32>
    %98 = arith.mulf %97, %97 : vector<1x128xf32>
    %99 = arith.addf %90, %98 : vector<1x128xf32>
    %100 = arith.mulf %6, %21 : vector<1x128xf32>
    %101 = arith.mulf %7, %25 : vector<1x128xf32>
    %102 = arith.addf %100, %101 : vector<1x128xf32>
    %103 = arith.mulf %8, %29 : vector<1x128xf32>
    %104 = arith.addf %102, %103 : vector<1x128xf32>
    %105 = arith.mulf %9, %33 : vector<1x128xf32>
    %106 = arith.addf %104, %105 : vector<1x128xf32>
    %107 = arith.mulf %106, %106 : vector<1x128xf32>
    %108 = arith.addf %99, %107 : vector<1x128xf32>
    %109 = arith.mulf %10, %18 : vector<1x128xf32>
    %110 = arith.mulf %11, %22 : vector<1x128xf32>
    %111 = arith.addf %109, %110 : vector<1x128xf32>
    %112 = arith.mulf %12, %26 : vector<1x128xf32>
    %113 = arith.addf %111, %112 : vector<1x128xf32>
    %114 = arith.mulf %13, %30 : vector<1x128xf32>
    %115 = arith.addf %113, %114 : vector<1x128xf32>
    %116 = arith.mulf %115, %115 : vector<1x128xf32>
    %117 = arith.addf %108, %116 : vector<1x128xf32>
    %118 = arith.mulf %10, %19 : vector<1x128xf32>
    %119 = arith.mulf %11, %23 : vector<1x128xf32>
    %120 = arith.addf %118, %119 : vector<1x128xf32>
    %121 = arith.mulf %12, %27 : vector<1x128xf32>
    %122 = arith.addf %120, %121 : vector<1x128xf32>
    %123 = arith.mulf %13, %31 : vector<1x128xf32>
    %124 = arith.addf %122, %123 : vector<1x128xf32>
    %125 = arith.mulf %124, %124 : vector<1x128xf32>
    %126 = arith.addf %117, %125 : vector<1x128xf32>
    %127 = arith.mulf %10, %20 : vector<1x128xf32>
    %128 = arith.mulf %11, %24 : vector<1x128xf32>
    %129 = arith.addf %127, %128 : vector<1x128xf32>
    %130 = arith.mulf %12, %28 : vector<1x128xf32>
    %131 = arith.addf %129, %130 : vector<1x128xf32>
    %132 = arith.mulf %13, %32 : vector<1x128xf32>
    %133 = arith.addf %131, %132 : vector<1x128xf32>
    %cst_4 = arith.constant 1.000000e+00 : f32
    %134 = vector.broadcast %cst_4 : f32 to vector<1x128xf32>
    %135 = arith.subf %133, %134 : vector<1x128xf32>
    %136 = arith.mulf %135, %135 : vector<1x128xf32>
    %137 = arith.addf %126, %136 : vector<1x128xf32>
    %138 = arith.mulf %10, %21 : vector<1x128xf32>
    %139 = arith.mulf %11, %25 : vector<1x128xf32>
    %140 = arith.addf %138, %139 : vector<1x128xf32>
    %141 = arith.mulf %12, %29 : vector<1x128xf32>
    %142 = arith.addf %140, %141 : vector<1x128xf32>
    %143 = arith.mulf %13, %33 : vector<1x128xf32>
    %144 = arith.addf %142, %143 : vector<1x128xf32>
    %145 = arith.mulf %144, %144 : vector<1x128xf32>
    %146 = arith.addf %137, %145 : vector<1x128xf32>
    %147 = arith.mulf %14, %18 : vector<1x128xf32>
    %148 = arith.mulf %15, %22 : vector<1x128xf32>
    %149 = arith.addf %147, %148 : vector<1x128xf32>
    %150 = arith.mulf %16, %26 : vector<1x128xf32>
    %151 = arith.addf %149, %150 : vector<1x128xf32>
    %152 = arith.mulf %17, %30 : vector<1x128xf32>
    %153 = arith.addf %151, %152 : vector<1x128xf32>
    %154 = arith.mulf %153, %153 : vector<1x128xf32>
    %155 = arith.addf %146, %154 : vector<1x128xf32>
    %156 = arith.mulf %14, %19 : vector<1x128xf32>
    %157 = arith.mulf %15, %23 : vector<1x128xf32>
    %158 = arith.addf %156, %157 : vector<1x128xf32>
    %159 = arith.mulf %16, %27 : vector<1x128xf32>
    %160 = arith.addf %158, %159 : vector<1x128xf32>
    %161 = arith.mulf %17, %31 : vector<1x128xf32>
    %162 = arith.addf %160, %161 : vector<1x128xf32>
    %163 = arith.mulf %162, %162 : vector<1x128xf32>
    %164 = arith.addf %155, %163 : vector<1x128xf32>
    %165 = arith.mulf %14, %20 : vector<1x128xf32>
    %166 = arith.mulf %15, %24 : vector<1x128xf32>
    %167 = arith.addf %165, %166 : vector<1x128xf32>
    %168 = arith.mulf %16, %28 : vector<1x128xf32>
    %169 = arith.addf %167, %168 : vector<1x128xf32>
    %170 = arith.mulf %17, %32 : vector<1x128xf32>
    %171 = arith.addf %169, %170 : vector<1x128xf32>
    %172 = arith.mulf %171, %171 : vector<1x128xf32>
    %173 = arith.addf %164, %172 : vector<1x128xf32>
    %174 = arith.mulf %14, %21 : vector<1x128xf32>
    %175 = arith.mulf %15, %25 : vector<1x128xf32>
    %176 = arith.addf %174, %175 : vector<1x128xf32>
    %177 = arith.mulf %16, %29 : vector<1x128xf32>
    %178 = arith.addf %176, %177 : vector<1x128xf32>
    %179 = arith.mulf %17, %33 : vector<1x128xf32>
    %180 = arith.addf %178, %179 : vector<1x128xf32>
    %cst_5 = arith.constant 1.000000e+00 : f32
    %181 = vector.broadcast %cst_5 : f32 to vector<1x128xf32>
    %182 = arith.subf %180, %181 : vector<1x128xf32>
    %183 = arith.mulf %182, %182 : vector<1x128xf32>
    %184 = arith.addf %173, %183 : vector<1x128xf32>
    %185 = vector.shape_cast %184 : vector<1x128xf32> to vector<1x1x128xf32>
    %cst_6 = arith.constant dense<0.000000e+00> : vector<1xf32>
    %186 = vector.multi_reduction <add>, %185, %cst_6 [1, 2] : vector<1x1x128xf32> to vector<1xf32>
    %187 = vector.shape_cast %186 : vector<1xf32> to vector<1x1x1xf32>
    %188 = vector.extract %187[0, 0, 0] : f32 from vector<1x1x1xf32>
    %c0_7 = arith.constant 0 : index
    %c0_8 = arith.constant 0 : index
    %189 = memref.load %arg3[%c0_7, %c0_8] : memref<1x1xf32, #tpu.memory_space<smem>>
    memref.store %188, %arg3[%c0_7, %c0_8] : memref<1x1xf32, #tpu.memory_space<smem>>
    return
  }
  func.func @transform_0(%arg0: i32) -> (i32, i32) {
    %c0_i32 = arith.constant 0 : i32
    %c0_i32_0 = arith.constant 0 : i32
    return %c0_i32, %arg0 : i32, i32
  }
  func.func @transform_1(%arg0: i32) -> (i32, i32) {
    %c0_i32 = arith.constant 0 : i32
    %c0_i32_0 = arith.constant 0 : i32
    return %c0_i32, %arg0 : i32, i32
  }
  func.func @transform_2(%arg0: i32) -> (i32, i32) {
    %c0_i32 = arith.constant 0 : i32
    %c0_i32_0 = arith.constant 0 : i32
    return %arg0, %c0_i32 : i32, i32
  }
}

</mosaic_0001>

<llo_original>
// kernel: tpu_custom_call.1
$region0: #{tpu_custom_call.1}
  #allocation0 [shape = 'u32[]', space=smem, size = 0x4, offset = 0x4, fixed_abs, tag = 'smem constant byte address 0x4 - core index']
  #allocation1 [shape = 'u32[72,128]{1,0:T(1,128)}', space=vmem, size = 0x9000, scoped, tag = 'internal scratch']
  %s0 = inlined_call_operand.hbm [shape: f32[16,128], index: 0, kind: input, shape index: {}]
  %s1 = inlined_call_operand.hbm [shape: f32[16,128], index: 1, kind: input, shape index: {}]
  %s2 = inlined_call_operand.hbm [shape: f32[1,1], index: 2, kind: output, shape index: {}]
  %s3 = sld [smem:[#allocation0]]
  $region26: #{tpu_custom_call.1} parent=0
    _
  %s5 = ssub.s32 1, %s3
  %s6 = scalar_select 0, %s5, %s3
  $region1: #{tpu_custom_call.1} parent=0
    #allocation2 [shape = 'u8[8192]{0}', space=vmem, size = 0x2000, scoped, tag = 'input window, operand 0, single buffered']
    #allocation3 [shape = 's32[1]{0}', space=sflag, size = 0x4, scoped, tag = 'scoped memory for tpu_custom_call.1']
    #allocation4 [shape = 's32[1]{0}', space=sflag, size = 0x4, scoped, tag = 'scoped memory for tpu_custom_call.1']
    #allocation5 [shape = 'u8[8192]{0}', space=vmem, size = 0x2000, scoped, tag = 'input window, operand 1, single buffered']
    #allocation6 [shape = 's32[1]{0}', space=sflag, size = 0x4, scoped, tag = 'scoped memory for tpu_custom_call.1']
    #allocation7 [shape = 'u8[512]{0}', space=smem, size = 0x200, scoped, tag = 'output window, operand 0, single buffered']
    %7 = vsyncpa [#allocation3], 0
    %8 = vsyncpa [#allocation6], 0
    %9 = vsyncpa [#allocation4], 0
    // Predicated region
    $region2: #{tpu_custom_call.1} parent=1 // pred_check
      _
    $region3: #{tpu_custom_call.1} parent=1 // pred_check_branch
      %11 = sbr.rel (0) target = $region5
    $region4: #{tpu_custom_call.1} parent=1 // pred_region
      %13 = vsyncadd [#allocation3], 0
      %s14 = sshll.u32 %s0, 4
      %s15 = int_to_ptr.hbm [resolvable:$true] %s14
      %s16 = sshll.u32 [#allocation2], 4
      %s17 = int_to_ptr.vmem [resolvable:$true] %s16
      %22 = dma.hbm_to_vmem [thread:$0]  %s15, 256, %s17, [#allocation3], 128, 128, 8
    $region5: #{tpu_custom_call.1} parent=1 // pred_fallthru
      _
    // Predicated region
    $region6: #{tpu_custom_call.1} parent=1 // pred_check
      _
    $region7: #{tpu_custom_call.1} parent=1 // pred_check_branch
      %24 = sbr.rel (0) target = $region9
    $region8: #{tpu_custom_call.1} parent=1 // pred_region
      %26 = vsyncadd [#allocation6], 0
      %s27 = sshll.u32 %s1, 4
      %s28 = int_to_ptr.hbm [resolvable:$true] %s27
      %s29 = sshll.u32 [#allocation5], 4
      %s30 = int_to_ptr.vmem [resolvable:$true] %s29
      %35 = dma.hbm_to_vmem [thread:$0]  %s28, 256, %s30, [#allocation6], 128, 128, 8
    $region9: #{tpu_custom_call.1} parent=1 // pred_fallthru
      _
    // Predicated region
    $region10: #{tpu_custom_call.1} parent=1 // pred_check
      _
    $region11: #{tpu_custom_call.1} parent=1 // pred_check_branch
      %37 = sbr.rel (0) target = $region13
    $region12: #{tpu_custom_call.1} parent=1 // pred_region
      %39 = dma.done [#allocation3], 256
    $region13: #{tpu_custom_call.1} parent=1 // pred_fallthru
      _
    // Predicated region
    $region14: #{tpu_custom_call.1} parent=1 // pred_check
      _
    $region15: #{tpu_custom_call.1} parent=1 // pred_check_branch
      %41 = sbr.rel (0) target = $region17
    $region16: #{tpu_custom_call.1} parent=1 // pred_region
      %43 = dma.done [#allocation6], 256
    $region17: #{tpu_custom_call.1} parent=1 // pred_fallthru
      _
    %v44 = vld [vmem:[#allocation2] sm:$0xff]
    %v45 = vld [vmem:[#allocation2 + $0x8] sm:$0xff]
    %v46 = vld [vmem:[#allocation5] sm:$0xff]
    %v47 = vld [vmem:[#allocation5 + $0x8] sm:$0xff]
    %v48 = vmul.f32 %v44, %v46
    %v50 = vrot.slane %v46, 3
    %v52 = vmul.f32 %v44, %v50
    %v54 = vrot.slane %v52, 1
    %v56 = vadd.f32 %v48, %v54
    %v58 = vrot.slane %v47, 6
    %v60 = vmul.f32 %v44, %v58
    %v62 = vrot.slane %v60, 2
    %v64 = vadd.f32 %v56, %v62
    %v65 = vrot.slane %v47, 1
    %v67 = vmul.f32 %v44, %v65
    %v69 = vrot.slane %v67, 3
    %v71 = vadd.f32 %v64, %v69
    %v72 = vsub.f32 %v71, 1.0
    %v73 = vmul.f32 %v72, %v72
    %v74 = vrot.slane %v46, 1
    %v76 = vmul.f32 %v44, %v74
    %v77 = vrot.slane %v46, 4
    %v79 = vmul.f32 %v44, %v77
    %v81 = vrot.slane %v79, 1
    %v83 = vadd.f32 %v76, %v81
    %v84 = vrot.slane %v47, 7
    %v86 = vmul.f32 %v44, %v84
    %v88 = vrot.slane %v86, 2
    %v90 = vadd.f32 %v83, %v88
    %v91 = vrot.slane %v47, 2
    %v93 = vmul.f32 %v44, %v91
    %v95 = vrot.slane %v93, 3
    %v97 = vadd.f32 %v90, %v95
    %v98 = vmul.f32 %v97, %v97
    %v99 = vadd.f32 %v73, %v98
    %v100 = vrot.slane %v46, 2
    %v102 = vmul.f32 %v44, %v100
    %v103 = vrot.slane %v46, 5
    %v105 = vmul.f32 %v44, %v103
    %v107 = vrot.slane %v105, 1
    %v109 = vadd.f32 %v102, %v107
    %v110 = vmul.f32 %v44, %v47
    %v112 = vrot.slane %v110, 2
    %v114 = vadd.f32 %v109, %v112
    %v115 = vrot.slane %v47, 3
    %v117 = vmul.f32 %v44, %v115
    %v119 = vrot.slane %v117, 3
    %v121 = vadd.f32 %v114, %v119
    %v122 = vmul.f32 %v121, %v121
    %v123 = vadd.f32 %v99, %v122
    %v124 = vrot.slane %v46, 6
    %v126 = vmul.f32 %v44, %v124
    %v128 = vrot.slane %v126, 1
    %v130 = vadd.f32 %v52, %v128
    %v131 = vrot.slane %v67, 2
    %v133 = vadd.f32 %v130, %v131
    %v134 = vrot.slane %v47, 4
    %v136 = vmul.f32 %v44, %v134
    %v138 = vrot.slane %v136, 3
    %v140 = vadd.f32 %v133, %v138
    %v141 = vmul.f32 %v140, %v140
    %v142 = vadd.f32 %v123, %v141
    %v143 = vrot.slane %v46, 7
    %v145 = vmul.f32 %v44, %v143
    %v147 = vrot.slane %v145, 1
    %v149 = vadd.f32 %v79, %v147
    %v150 = vrot.slane %v93, 2
    %v152 = vadd.f32 %v149, %v150
    %v153 = vrot.slane %v47, 5
    %v155 = vmul.f32 %v44, %v153
    %v157 = vrot.slane %v155, 3
    %v159 = vadd.f32 %v152, %v157
    %v160 = vmul.f32 %v159, %v159
    %v162 = vrot.slane %v160, 4
    %v164 = vadd.f32 %v142, %v162
    %v166 = vrot.slane %v48, 1
    %v168 = vadd.f32 %v105, %v166
    %v169 = vrot.slane %v117, 2
    %v171 = vadd.f32 %v168, %v169
    %v172 = vrot.slane %v60, 3
    %v174 = vadd.f32 %v171, %v172
    %v175 = vsub.f32 %v174, 1.0
    %v176 = vmul.f32 %v175, %v175
    %v178 = vrot.slane %v176, 4
    %v180 = vadd.f32 %v164, %v178
    %v182 = vrot.slane %v76, 1
    %v184 = vadd.f32 %v126, %v182
    %v185 = vrot.slane %v136, 2
    %v187 = vadd.f32 %v184, %v185
    %v188 = vrot.slane %v86, 3
    %v190 = vadd.f32 %v187, %v188
    %v191 = vmul.f32 %v190, %v190
    %v193 = vrot.slane %v191, 4
    %v195 = vadd.f32 %v180, %v193
    %v197 = vrot.slane %v102, 1
    %v199 = vadd.f32 %v145, %v197
    %v200 = vrot.slane %v155, 2
    %v202 = vadd.f32 %v199, %v200
    %v203 = vrot.slane %v110, 3
    %v205 = vadd.f32 %v202, %v203
    %v206 = vmul.f32 %v205, %v205
    %v208 = vrot.slane %v206, 4
    %v210 = vadd.f32 %v195, %v208
    %v211 = vmul.f32 %v45, %v46
    %v212 = vmul.f32 %v45, %v50
    %v214 = vrot.slane %v212, 1
    %v216 = vadd.f32 %v211, %v214
    %v217 = vmul.f32 %v45, %v58
    %v219 = vrot.slane %v217, 2
    %v221 = vadd.f32 %v216, %v219
    %v222 = vmul.f32 %v45, %v65
    %v224 = vrot.slane %v222, 3
    %v226 = vadd.f32 %v221, %v224
    %v227 = vmul.f32 %v226, %v226
    %v228 = vadd.f32 %v210, %v227
    %v229 = vmul.f32 %v45, %v74
    %v230 = vmul.f32 %v45, %v77
    %v232 = vrot.slane %v230, 1
    %v234 = vadd.f32 %v229, %v232
    %v235 = vmul.f32 %v45, %v84
    %v237 = vrot.slane %v235, 2
    %v239 = vadd.f32 %v234, %v237
    %v240 = vmul.f32 %v45, %v91
    %v242 = vrot.slane %v240, 3
    %v244 = vadd.f32 %v239, %v242
    %v245 = vmul.f32 %v244, %v244
    %v246 = vadd.f32 %v228, %v245
    %v247 = vmul.f32 %v45, %v100
    %v248 = vmul.f32 %v45, %v103
    %v250 = vrot.slane %v248, 1
    %v252 = vadd.f32 %v247, %v250
    %v253 = vmul.f32 %v45, %v47
    %v255 = vrot.slane %v253, 2
    %v257 = vadd.f32 %v252, %v255
    %v258 = vmul.f32 %v45, %v115
    %v260 = vrot.slane %v258, 3
    %v262 = vadd.f32 %v257, %v260
    %v263 = vsub.f32 %v262, 1.0
    %v264 = vmul.f32 %v263, %v263
    %v265 = vadd.f32 %v246, %v264
    %v266 = vmul.f32 %v45, %v124
    %v268 = vrot.slane %v266, 1
    %v270 = vadd.f32 %v212, %v268
    %v271 = vrot.slane %v222, 2
    %v273 = vadd.f32 %v270, %v271
    %v274 = vmul.f32 %v45, %v134
    %v276 = vrot.slane %v274, 3
    %v278 = vadd.f32 %v273, %v276
    %v279 = vmul.f32 %v278, %v278
    %v280 = vadd.f32 %v265, %v279
    %v281 = vmul.f32 %v45, %v143
    %v283 = vrot.slane %v281, 1
    %v285 = vadd.f32 %v230, %v283
    %v286 = vrot.slane %v240, 2
    %v288 = vadd.f32 %v285, %v286
    %v289 = vmul.f32 %v45, %v153
    %v291 = vrot.slane %v289, 3
    %v293 = vadd.f32 %v288, %v291
    %v294 = vmul.f32 %v293, %v293
    %v296 = vrot.slane %v294, 4
    %v298 = vadd.f32 %v280, %v296
    %v300 = vrot.slane %v211, 1
    %v302 = vadd.f32 %v248, %v300
    %v303 = vrot.slane %v258, 2
    %v305 = vadd.f32 %v302, %v303
    %v306 = vrot.slane %v217, 3
    %v308 = vadd.f32 %v305, %v306
    %v309 = vmul.f32 %v308, %v308
    %v311 = vrot.slane %v309, 4
    %v313 = vadd.f32 %v298, %v311
    %v315 = vrot.slane %v229, 1
    %v317 = vadd.f32 %v266, %v315
    %v318 = vrot.slane %v274, 2
    %v320 = vadd.f32 %v317, %v318
    %v321 = vrot.slane %v235, 3
    %v323 = vadd.f32 %v320, %v321
    %v324 = vmul.f32 %v323, %v323
    %v326 = vrot.slane %v324, 4
    %v328 = vadd.f32 %v313, %v326
    %v330 = vrot.slane %v247, 1
    %v332 = vadd.f32 %v281, %v330
    %v333 = vrot.slane %v289, 2
    %v335 = vadd.f32 %v332, %v333
    %v336 = vrot.slane %v253, 3
    %v338 = vadd.f32 %v335, %v336
    %v339 = vsub.f32 %v338, 1.0
    %v340 = vmul.f32 %v339, %v339
    %v342 = vrot.slane %v340, 4
    %v344 = vadd.f32 %v328, %v342
    %vm345 = vcmask 1040384
    %v346 = vsel %vm345, %v344, 0.0
    %347 = vadd.xlane.f32.xlu0 %v346
    %v348 = vpop.xlane.xlu0 %347
    %v349 = vrot.slane %v348, 4
    %v350 = vadd.f32 %v348, %v349
    %v351 = vrot.slane %v350, 2
    %v352 = vadd.f32 %v350, %v351
    %v353 = vrot.slane %v352, 1
    %v354 = vadd.f32 %v352, %v353
    %s355 = vtos %v354
    %s356 = scalar_lea.smem [#allocation7], 0
    %357 = sst [smem:[%s356]] %s355
    // Predicated region
    $region18: #{tpu_custom_call.1} parent=1 // pred_check
      _
    $region19: #{tpu_custom_call.1} parent=1 // pred_check_branch
      %359 = sbr.rel (0) target = $region21
    $region20: #{tpu_custom_call.1} parent=1 // pred_region
      %361 = vsyncadd [#allocation4], 0
      %s363 = sshll.u32 %s2, 4
      %s364 = int_to_ptr.hbm [resolvable:$true] %s363
      %366 = dma.smem_to_hbm [#allocation7], 16, %s364, [#allocation4]
    $region21: #{tpu_custom_call.1} parent=1 // pred_fallthru
      _
    // Predicated region
    $region22: #{tpu_custom_call.1} parent=1 // pred_check
      _
    $region23: #{tpu_custom_call.1} parent=1 // pred_check_branch
      %368 = sbr.rel (0) target = $region25
    $region24: #{tpu_custom_call.1} parent=1 // pred_region
      %370 = dma.done [#allocation4], 16
    $region25: #{tpu_custom_call.1} parent=1 // pred_fallthru
      _
    %371 = sfence
    %372 = vsyncpa [#allocation3], 1
    %373 = vsyncpa [#allocation6], 1
    %374 = vsyncpa [#allocation4], 1

</llo_original>
